<compile_context>
chip_gen: v7x
topology: tpu7x:2x2x1
jax: 0.10.0
libtpu: 0.0.40
codegen_flags: <defaults>
</compile_context>

<pallas_src>
import jax
import jax.numpy as jnp
from jax.experimental import pallas as pl
from jax.experimental.pallas import tpu as pltpu


def _round_up(n, m):
    return ((n + m - 1) // m) * m


# ---------------------------------------------------------------------------
# Kernel
# ---------------------------------------------------------------------------
def _propogator_kernel(x_ref, h_ref, wx_ref, wh_ref, wth_ref, b_ref, out_ref):
    H = out_ref.shape[-1]

    h32 = h_ref[...].astype(jnp.float32)
    xm = x_ref[...].astype(wx_ref.dtype)      # MXU operand dtype (bf16 or f32)
    hm = h_ref[...].astype(wh_ref.dtype)

    # Fused, r-independent linear slab [TB, 3H]; f32 accumulation on the MXU.
    lin = (jnp.dot(xm, wx_ref[...], preferred_element_type=jnp.float32)
           + jnp.dot(hm, wh_ref[...], preferred_element_type=jnp.float32)
           + b_ref[...].astype(jnp.float32))

    # r and z in a single sigmoid pass over the contiguous 2H slab.
    rz = jax.nn.sigmoid(lin[:, :2 * H])
    r = rz[:, :H]
    z = rz[:, H:]

    # The only r-dependent matmul; tanh / blend (EUP + VALU) overlap while it drains.
    rh = (r * h32).astype(wth_ref.dtype)
    h_hat = jnp.tanh(lin[:, 2 * H:]
                     + jnp.dot(rh, wth_ref[...], preferred_element_type=jnp.float32))

    out_ref[...] = ((1.0 - z) * h32 + z * h_hat).astype(out_ref.dtype)


# ---------------------------------------------------------------------------
# Parameter fusion (do once, outside any recurrent loop)
# ---------------------------------------------------------------------------
def prepare_params(params, mxu_dtype=jnp.bfloat16):
    """Fuse the three Linear layers for the kernel. bf16 operands are the production
    default on every generation (v5e's MXU has no fast f32 path)."""
    H = params["wr_h"].shape[0]
    wx_all3 = jnp.concatenate(
        [params["wr_x"], params["wz_x"], params["wt_x"]], axis=1).astype(mxu_dtype)
    wh_all3 = jnp.concatenate(
        [params["wr_h"], params["wz_h"],
         jnp.zeros((H, H), params["wr_h"].dtype)], axis=1).astype(mxu_dtype)
    wt_h = params["wt_h"].astype(mxu_dtype)
    b_all = jnp.concatenate(
        [params["br"], params["bz"], params["bt"]], axis=1).astype(jnp.float32)
    return {"wx_all3": wx_all3, "wh_all3": wh_all3, "wt_h": wt_h, "b_all": b_all}


# ---------------------------------------------------------------------------
# Tiling heuristics
# ---------------------------------------------------------------------------
def _device_kind():
    try:
        return jax.devices()[0].device_kind.lower()
    except Exception:
        return ""


def _default_block_rows(kind):
    # Memory-bound kernel: size the tile so each grid step moves well past the ~0.35us
    # per-step overhead worth of HBM traffic for that generation's bandwidth.
    if "v5e" in kind or "v5 lite" in kind or "v5lite" in kind:
        return 1024
    if "v7" in kind:
        return 4096
    return 2048   # v6e / default


def _pick_block_rows(B, target, split_for_two_cores):
    target = max(8, (target // 8) * 8)
    if B <= target:
        if split_for_two_cores and B >= 16:
            # >=2 parallel grid steps so v7x's two TensorCores both get work.
            return _round_up(pl.cdiv(B, 2), 8)
        return B          # single block == full dim; never needs padding
    return target


def _vmem_cap_bytes():
    try:
        cap = getattr(pltpu.get_tpu_info(), "vmem_capacity_bytes", None)
        if cap:
            return int(cap)
    except Exception:
        pass
    return 64 * 2 ** 20   # v7x-conservative fallback


# ---------------------------------------------------------------------------
# Wrapper
# ---------------------------------------------------------------------------
def propogator(x, h, fused, *, block_b=None):
    """x: [B, input_dim], h: [B, hidden_dim] -> [B, hidden_dim]."""
    B, input_dim = x.shape
    hidden_dim = h.shape[1]
    out_dtype = h.dtype   # match the recurrent-state dtype

    kind = _device_kind()
    tb = block_b if block_b is not None else _pick_block_rows(
        B, _default_block_rows(kind), split_for_two_cores=("v7" in kind))
    # Sanitize: block must be a multiple of 8 rows or equal the full batch dim.
    tb = min(tb, B)
    if tb != B:
        tb = max(8, (tb // 8) * 8)

    # Ragged last tile handled by Pallas OOB masking -> no per-call pad / slice copies.
    grid = (pl.cdiv(B, tb),)

    wx_all3 = fused["wx_all3"]
    wh_all3 = fused["wh_all3"]
    wt_h = fused["wt_h"]
    b_all = fused["b_all"]

    # VMEM budget: double-buffered activation tiles + DOUBLE-buffered resident weight
    # blocks (Pallas double-buffers constant-index inputs too) + intermediates + slack.
    w_itemsize = jnp.dtype(wx_all3.dtype).itemsize
    act_bytes = 2 * tb * (input_dim + 2 * hidden_dim) * 4
    w_bytes = 2 * ((wx_all3.size + wh_all3.size + wt_h.size) * w_itemsize
                   + b_all.size * 4)
    tmp_bytes = tb * 8 * hidden_dim * 4
    vmem_limit = int(min(max(act_bytes + w_bytes + tmp_bytes + (4 << 20), 16 << 20),
                         int(0.9 * _vmem_cap_bytes())))

    return pl.pallas_call(
        _propogator_kernel,
        out_shape=jax.ShapeDtypeStruct((B, hidden_dim), out_dtype),
        grid=grid,
        in_specs=[
            pl.BlockSpec((tb, input_dim), lambda i: (i, 0)),                    # x tile
            pl.BlockSpec((tb, hidden_dim), lambda i: (i, 0)),                   # h tile
            pl.BlockSpec((input_dim, 3 * hidden_dim), lambda i: (0, 0)),        # wx_all3 (resident)
            pl.BlockSpec((hidden_dim, 3 * hidden_dim), lambda i: (0, 0)),       # wh_all3 (resident)
            pl.BlockSpec((hidden_dim, hidden_dim), lambda i: (0, 0)),           # wt_h    (resident)
            pl.BlockSpec((1, 3 * hidden_dim), lambda i: (0, 0)),                # b_all   (resident)
        ],
        out_specs=pl.BlockSpec((tb, hidden_dim), lambda i: (i, 0)),
        compiler_params=pltpu.CompilerParams(
            dimension_semantics=("parallel",),   # shard batch tiles across TCs where present
            vmem_limit_bytes=vmem_limit,
        ),
    )(x, h, wx_all3, wh_all3, wt_h, b_all)


# ---------------------------------------------------------------------------
# Synthetic params + pure-JAX reference
# ---------------------------------------------------------------------------
def init_params(key, input_dim, hidden_dim, dtype=jnp.float32):
    """Synthetic weights matching nn.Linear(input_dim+hidden_dim, hidden_dim), stored
    pre-transposed and split into the x-part [input_dim, H] and the h-part [H, H]."""
    ks = jax.random.split(key, 9)
    scale = 1.0 / jnp.sqrt(jnp.float32(input_dim + hidden_dim))

    def w(k, m):
        return jax.random.uniform(k, (m, hidden_dim), dtype, -1.0, 1.0) * scale

    def b(k):
        return jax.random.uniform(k, (1, hidden_dim), dtype, -1.0, 1.0) * scale

    return {
        "wr_x": w(ks[0], input_dim), "wr_h": w(ks[1], hidden_dim), "br": b(ks[2]),
        "wz_x": w(ks[3], input_dim), "wz_h": w(ks[4], hidden_dim), "bz": b(ks[5]),
        "wt_x": w(ks[6], input_dim), "wt_h": w(ks[7], hidden_dim), "bt": b(ks[8]),
    }


def propogator_ref(x, h, p):
    """Pure-JAX reference mirroring the PyTorch forward exactly (f32)."""
    a = jnp.concatenate([x, h], axis=-1)
    wr = jnp.concatenate([p["wr_x"], p["wr_h"]], axis=0)
    wz = jnp.concatenate([p["wz_x"], p["wz_h"]], axis=0)
    wt = jnp.concatenate([p["wt_x"], p["wt_h"]], axis=0)
    r = jax.nn.sigmoid(a @ wr + p["br"])
    z = jax.nn.sigmoid(a @ wz + p["bz"])
    joined = jnp.concatenate([x, r * h], axis=1)
    h_hat = jnp.tanh(joined @ wt + p["bt"])
    return (1.0 - z) * h + z * h_hat


if __name__ == "__main__":
    B, INPUT_DIM, HIDDEN_DIM = 8, 16, 32

    key = jax.random.PRNGKey(0)
    k_x, k_h, k_p = jax.random.split(key, 3)

    x = jax.random.normal(k_x, (B, INPUT_DIM), jnp.float32)   # now_input_embedding
    h = jax.random.normal(k_h, (B, HIDDEN_DIM), jnp.float32)  # dis_pre_embedding
    params = init_params(k_p, INPUT_DIM, HIDDEN_DIM)

    ref = propogator_ref(x, h, params)

    # f32 MXU-operand path: tolerance-based (TPU f32 matmul is bf16-pass based, so it is
    # NOT bit-exact vs a pure-f32 reference).
    out_f32 = propogator(x, h, prepare_params(params, mxu_dtype=jnp.float32))
    jax.block_until_ready(out_f32)
    assert out_f32.shape == (B, HIDDEN_DIM)
    assert jnp.allclose(out_f32, ref, atol=2e-2, rtol=2e-2), "f32 kernel mismatch"

    # bf16 matmul-operand path (the production default on all generations): f32 MXU
    # accumulation + f32 gating math, so only small quantization error vs. f32 reference.
    out_bf16 = propogator(x, h, prepare_params(params, mxu_dtype=jnp.bfloat16))
    jax.block_until_ready(out_bf16)
    assert out_bf16.shape == (B, HIDDEN_DIM)
    assert jnp.allclose(out_bf16, ref, atol=5e-2, rtol=5e-2), "bf16 kernel mismatch"

    print("KERNEL_OK")
</pallas_src>

<mosaic_0001>
module attributes {stable_mosaic.version = 11 : i64} {
  func.func @_propogator_kernel(%arg0: i32, %arg1: memref<8x16xf32, #tpu.memory_space<vmem>>, %arg2: memref<8x32xf32, #tpu.memory_space<vmem>>, %arg3: memref<16x96xf32, #tpu.memory_space<vmem>>, %arg4: memref<32x96xf32, #tpu.memory_space<vmem>>, %arg5: memref<32x32xf32, #tpu.memory_space<vmem>>, %arg6: memref<1x96xf32, #tpu.memory_space<vmem>>, %arg7: memref<8x32xf32, #tpu.memory_space<vmem>>) attributes {dimension_semantics = [#tpu.dimension_semantics<parallel>], iteration_bounds = array<i64: 1>, scalar_prefetch = 0 : i64, scratch_operands = 0 : i64, tpu.core_type = #tpu.core_type<tc>, window_params = [{transform_indices = @transform_0, window_bounds = array<i64: 8, 16>}, {transform_indices = @transform_1, window_bounds = array<i64: 8, 32>}, {pipeline_mode = #tpu.pipeline_mode<synchronous>, transform_indices = @transform_2, window_bounds = array<i64: 16, 96>}, {pipeline_mode = #tpu.pipeline_mode<synchronous>, transform_indices = @transform_3, window_bounds = array<i64: 32, 96>}, {pipeline_mode = #tpu.pipeline_mode<synchronous>, transform_indices = @transform_4, window_bounds = array<i64: 32, 32>}, {pipeline_mode = #tpu.pipeline_mode<synchronous>, transform_indices = @transform_5, window_bounds = array<i64: 1, 96>}, {transform_indices = @transform_6, window_bounds = array<i64: 8, 32>}]} {
    %c0 = arith.constant 0 : index
    %c0_0 = arith.constant 0 : index
    %0 = vector.load %arg2[%c0, %c0_0] : memref<8x32xf32, #tpu.memory_space<vmem>>, vector<8x32xf32>
    %c0_1 = arith.constant 0 : index
    %c0_2 = arith.constant 0 : index
    %1 = vector.load %arg1[%c0_1, %c0_2] : memref<8x16xf32, #tpu.memory_space<vmem>>, vector<8x16xf32>
    %c0_3 = arith.constant 0 : index
    %c0_4 = arith.constant 0 : index
    %2 = vector.load %arg2[%c0_3, %c0_4] : memref<8x32xf32, #tpu.memory_space<vmem>>, vector<8x32xf32>
    %c0_5 = arith.constant 0 : index
    %c0_6 = arith.constant 0 : index
    %3 = vector.load %arg3[%c0_5, %c0_6] : memref<16x96xf32, #tpu.memory_space<vmem>>, vector<16x96xf32>
    %cst = arith.constant dense<0.000000e+00> : vector<8x96xf32>
    %4 = tpu.matmul %1, %3, %cst {dimension_numbers = #tpu.dot_dimension_numbers<[1], [0], [0], [1], [0, 0, 1, 1], [], []>} : vector<8x16xf32>, vector<16x96xf32>, vector<8x96xf32> -> vector<8x96xf32>
    %c0_7 = arith.constant 0 : index
    %c0_8 = arith.constant 0 : index
    %5 = vector.load %arg4[%c0_7, %c0_8] : memref<32x96xf32, #tpu.memory_space<vmem>>, vector<32x96xf32>
    %cst_9 = arith.constant dense<0.000000e+00> : vector<8x96xf32>
    %6 = tpu.matmul %2, %5, %cst_9 {dimension_numbers = #tpu.dot_dimension_numbers<[1], [0], [0], [1], [0, 0, 1, 1], [], []>} : vector<8x32xf32>, vector<32x96xf32>, vector<8x96xf32> -> vector<8x96xf32>
    %7 = arith.addf %4, %6 : vector<8x96xf32>
    %c0_10 = arith.constant 0 : index
    %c0_11 = arith.constant 0 : index
    %8 = vector.load %arg6[%c0_10, %c0_11] : memref<1x96xf32, #tpu.memory_space<vmem>>, vector<1x96xf32>
    %9 = vector.broadcast %8 : vector<1x96xf32> to vector<8x96xf32>
    %10 = arith.addf %7, %9 : vector<8x96xf32>
    %11 = vector.extract_strided_slice %10 {offsets = [0, 0], sizes = [8, 64], strides = [1, 1]} : vector<8x96xf32> to vector<8x64xf32>
    %12 = arith.negf %11 : vector<8x64xf32>
    %13 = math.exp %12 : vector<8x64xf32>
    %cst_12 = arith.constant 1.000000e+00 : f32
    %14 = vector.broadcast %cst_12 : f32 to vector<8x64xf32>
    %15 = arith.addf %14, %13 : vector<8x64xf32>
    %16 = arith.divf %14, %15 : vector<8x64xf32>
    %17 = vector.extract_strided_slice %16 {offsets = [0, 0], sizes = [8, 32], strides = [1, 1]} : vector<8x64xf32> to vector<8x32xf32>
    %18 = vector.extract_strided_slice %16 {offsets = [0, 32], sizes = [8, 32], strides = [1, 1]} : vector<8x64xf32> to vector<8x32xf32>
    %19 = arith.mulf %17, %0 : vector<8x32xf32>
    %20 = vector.extract_strided_slice %10 {offsets = [0, 64], sizes = [8, 32], strides = [1, 1]} : vector<8x96xf32> to vector<8x32xf32>
    %c0_13 = arith.constant 0 : index
    %c0_14 = arith.constant 0 : index
    %21 = vector.load %arg5[%c0_13, %c0_14] : memref<32x32xf32, #tpu.memory_space<vmem>>, vector<32x32xf32>
    %cst_15 = arith.constant dense<0.000000e+00> : vector<8x32xf32>
    %22 = tpu.matmul %19, %21, %cst_15 {dimension_numbers = #tpu.dot_dimension_numbers<[1], [0], [0], [1], [0, 0, 1, 1], [], []>} : vector<8x32xf32>, vector<32x32xf32>, vector<8x32xf32> -> vector<8x32xf32>
    %23 = arith.addf %20, %22 : vector<8x32xf32>
    %24 = math.tanh %23 : vector<8x32xf32>
    %cst_16 = arith.constant 1.000000e+00 : f32
    %25 = vector.broadcast %cst_16 : f32 to vector<8x32xf32>
    %26 = arith.subf %25, %18 : vector<8x32xf32>
    %27 = arith.mulf %26, %0 : vector<8x32xf32>
    %28 = arith.mulf %18, %24 : vector<8x32xf32>
    %29 = arith.addf %27, %28 : vector<8x32xf32>
    %c0_17 = arith.constant 0 : index
    %c0_18 = arith.constant 0 : index
    %30 = vector.load %arg7[%c0_17, %c0_18] : memref<8x32xf32, #tpu.memory_space<vmem>>, vector<8x32xf32>
    tpu.vector_store %arg7[%c0_17, %c0_18], %29 {strides = array<i32>} : memref<8x32xf32, #tpu.memory_space<vmem>>, vector<8x32xf32>,
    return
  }
  func.func @transform_0(%arg0: i32) -> (i32, i32) {
    %c0_i32 = arith.constant 0 : i32
    %c0_i32_0 = arith.constant 0 : i32
    return %arg0, %c0_i32 : i32, i32
  }
  func.func @transform_1(%arg0: i32) -> (i32, i32) {
    %c0_i32 = arith.constant 0 : i32
    %c0_i32_0 = arith.constant 0 : i32
    return %arg0, %c0_i32 : i32, i32
  }
  func.func @transform_2(%arg0: i32) -> (i32, i32) {
    %c0_i32 = arith.constant 0 : i32
    %c0_i32_0 = arith.constant 0 : i32
    %c0_i32_1 = arith.constant 0 : i32
    return %c0_i32, %c0_i32_0 : i32, i32
  }
  func.func @transform_3(%arg0: i32) -> (i32, i32) {
    %c0_i32 = arith.constant 0 : i32
    %c0_i32_0 = arith.constant 0 : i32
    %c0_i32_1 = arith.constant 0 : i32
    return %c0_i32, %c0_i32_0 : i32, i32
  }
  func.func @transform_4(%arg0: i32) -> (i32, i32) {
    %c0_i32 = arith.constant 0 : i32
    %c0_i32_0 = arith.constant 0 : i32
    %c0_i32_1 = arith.constant 0 : i32
    return %c0_i32, %c0_i32_0 : i32, i32
  }
  func.func @transform_5(%arg0: i32) -> (i32, i32) {
    %c0_i32 = arith.constant 0 : i32
    %c0_i32_0 = arith.constant 0 : i32
    %c0_i32_1 = arith.constant 0 : i32
    return %c0_i32, %c0_i32_0 : i32, i32
  }
  func.func @transform_6(%arg0: i32) -> (i32, i32) {
    %c0_i32 = arith.constant 0 : i32
    %c0_i32_0 = arith.constant 0 : i32
    return %arg0, %c0_i32 : i32, i32
  }
}

</mosaic_0001>

<llo_original>
// kernel: tpu_custom_call.1
$region0: #{tpu_custom_call.1}
  #allocation0 [shape = 'u32[]', space=smem, size = 0x4, offset = 0x4, fixed_abs, tag = 'smem constant byte address 0x4 - core index']
  #allocation1 [shape = 'u32[144,128]{1,0:T(1,128)}', space=vmem, size = 0x12000, scoped, tag = 'internal scratch']
  %s0 = inlined_call_operand.hbm [shape: f32[8,16], index: 0, kind: input, shape index: {}]
  %s1 = inlined_call_operand.hbm [shape: f32[8,32], index: 1, kind: input, shape index: {}]
  %s2 = inlined_call_operand.hbm [shape: f32[16,96], index: 2, kind: input, shape index: {}]
  %s3 = inlined_call_operand.hbm [shape: f32[32,96], index: 3, kind: input, shape index: {}]
  %s4 = inlined_call_operand.hbm [shape: f32[32,32], index: 4, kind: input, shape index: {}]
  %s5 = inlined_call_operand.vmem [shape: f32[1,96], index: 5, kind: input, shape index: {}]
  %s6 = inlined_call_operand.hbm [shape: f32[8,32], index: 6, kind: output, shape index: {}]
  %s7 = sld [smem:[#allocation0]]
  $region54: #{tpu_custom_call.1} parent=0
    _
  %s9 = ssub.s32 1, %s7
  %s10 = scalar_select 0, %s9, %s7
  $region1: #{tpu_custom_call.1} parent=0
    #allocation2 [shape = 'u8[4096]{0}', space=vmem, size = 0x1000, scoped, tag = 'input window, operand 0, single buffered']
    #allocation3 [shape = 's32[1]{0}', space=sflag, size = 0x4, scoped, tag = 'scoped memory for tpu_custom_call.1']
    #allocation4 [shape = 's32[1]{0}', space=sflag, size = 0x4, scoped, tag = 'scoped memory for tpu_custom_call.1']
    #allocation5 [shape = 'u8[4096]{0}', space=vmem, size = 0x1000, scoped, tag = 'input window, operand 1, single buffered']
    #allocation6 [shape = 's32[1]{0}', space=sflag, size = 0x4, scoped, tag = 'scoped memory for tpu_custom_call.1']
    #allocation7 [shape = 'u8[8192]{0}', space=vmem, size = 0x2000, scoped, tag = 'input window, operand 2, single buffered']
    #allocation8 [shape = 'u8[16384]{0}', space=vmem, size = 0x4000, scoped, tag = 'input window, operand 3, single buffered']
    #allocation9 [shape = 's32[1]{0}', space=sflag, size = 0x4, scoped, tag = 'scoped memory for tpu_custom_call.1']
    #allocation10 [shape = 'u8[16384]{0}', space=vmem, size = 0x4000, scoped, tag = 'input window, operand 4, single buffered']
    #allocation11 [shape = 'u8[4096]{0}', space=vmem, size = 0x1000, scoped, tag = 'output window, operand 0, single buffered']
    %11 = vsyncpa [#allocation3], 0
    %12 = vsyncpa [#allocation6], 0
    %13 = vsyncpa [#allocation9], 0
    %14 = vsyncpa [#allocation4], 0
    // Predicated region
    $region2: #{tpu_custom_call.1} parent=1 // pred_check
      _
    $region3: #{tpu_custom_call.1} parent=1 // pred_check_branch
      %16 = sbr.rel (0) target = $region5
    $region4: #{tpu_custom_call.1} parent=1 // pred_region
      %s18 = ssub.s32 128, 128
      %19 = vsyncadd [#allocation3], %s18
      %s21 = sshll.u32 [#allocation2], 4
      %s22 = int_to_ptr.vmem [resolvable:$true] %s21
      %24 = dma.hbm_to_vmem [thread:$0]  %s0, 128, %s22, [#allocation3]
    $region5: #{tpu_custom_call.1} parent=1 // pred_fallthru
      _
    // Predicated region
    $region6: #{tpu_custom_call.1} parent=1 // pred_check
      _
    $region7: #{tpu_custom_call.1} parent=1 // pred_check_branch
      %26 = sbr.rel (0) target = $region9
    $region8: #{tpu_custom_call.1} parent=1 // pred_region
      %s28 = ssub.s32 128, 128
      %29 = vsyncadd [#allocation6], %s28
      %s31 = sshll.u32 [#allocation5], 4
      %s32 = int_to_ptr.vmem [resolvable:$true] %s31
      %34 = dma.hbm_to_vmem [thread:$0]  %s1, 128, %s32, [#allocation6]
    $region9: #{tpu_custom_call.1} parent=1 // pred_fallthru
      _
    // Predicated region
    $region10: #{tpu_custom_call.1} parent=1 // pred_check
      _
    $region11: #{tpu_custom_call.1} parent=1 // pred_check_branch
      %36 = sbr.rel (0) target = $region13
    $region12: #{tpu_custom_call.1} parent=1 // pred_region
      %s38 = ssub.s32 256, 256
      %39 = vsyncadd [#allocation6], %s38
      %s40 = sshll.u32 [#allocation7], 4
      %s41 = int_to_ptr.vmem [resolvable:$true] %s40
      %46 = dma.hbm_to_vmem [thread:$0]  %s2, 256, %s41, [#allocation6], 128, 128, 8
    $region13: #{tpu_custom_call.1} parent=1 // pred_fallthru
      _
    // Predicated region
    $region14: #{tpu_custom_call.1} parent=1 // pred_check
      _
    $region15: #{tpu_custom_call.1} parent=1 // pred_check_branch
      %48 = sbr.rel (0) target = $region17
    $region16: #{tpu_custom_call.1} parent=1 // pred_region
      %s50 = ssub.s32 512, 512
      %51 = vsyncadd [#allocation9], %s50
      %s52 = sshll.u32 [#allocation8], 4
      %s53 = int_to_ptr.vmem [resolvable:$true] %s52
      %58 = dma.hbm_to_vmem [thread:$0]  %s3, 512, %s53, [#allocation9], 128, 128, 8
    $region17: #{tpu_custom_call.1} parent=1 // pred_fallthru
      _
    // Predicated region
    $region18: #{tpu_custom_call.1} parent=1 // pred_check
      _
    $region19: #{tpu_custom_call.1} parent=1 // pred_check_branch
      %60 = sbr.rel (0) target = $region21
    $region20: #{tpu_custom_call.1} parent=1 // pred_region
      %s62 = ssub.s32 512, 512
      %63 = vsyncadd [#allocation9], %s62
      %s64 = sshll.u32 [#allocation10], 4
      %s65 = int_to_ptr.vmem [resolvable:$true] %s64
      %70 = dma.hbm_to_vmem [thread:$0]  %s4, 512, %s65, [#allocation9], 128, 128, 8
    $region21: #{tpu_custom_call.1} parent=1 // pred_fallthru
      _
    // Predicated region
    $region22: #{tpu_custom_call.1} parent=1 // pred_check
      _
    $region23: #{tpu_custom_call.1} parent=1 // pred_check_branch
      %72 = sbr.rel (0) target = $region25
    $region24: #{tpu_custom_call.1} parent=1 // pred_region
      _
    $region25: #{tpu_custom_call.1} parent=1 // pred_fallthru
      _
    // Predicated region
    $region26: #{tpu_custom_call.1} parent=1 // pred_check
      _
    $region27: #{tpu_custom_call.1} parent=1 // pred_check_branch
      %74 = sbr.rel (0) target = $region29
    $region28: #{tpu_custom_call.1} parent=1 // pred_region
      %75 = dma.done [#allocation3], 128
    $region29: #{tpu_custom_call.1} parent=1 // pred_fallthru
      _
    // Predicated region
    $region30: #{tpu_custom_call.1} parent=1 // pred_check
      _
    $region31: #{tpu_custom_call.1} parent=1 // pred_check_branch
      %77 = sbr.rel (0) target = $region33
    $region32: #{tpu_custom_call.1} parent=1 // pred_region
      %78 = dma.done [#allocation6], 128
    $region33: #{tpu_custom_call.1} parent=1 // pred_fallthru
      _
    // Predicated region
    $region34: #{tpu_custom_call.1} parent=1 // pred_check
      _
    $region35: #{tpu_custom_call.1} parent=1 // pred_check_branch
      %80 = sbr.rel (0) target = $region37
    $region36: #{tpu_custom_call.1} parent=1 // pred_region
      %81 = dma.done [#allocation6], 256
    $region37: #{tpu_custom_call.1} parent=1 // pred_fallthru
      _
    // Predicated region
    $region38: #{tpu_custom_call.1} parent=1 // pred_check
      _
    $region39: #{tpu_custom_call.1} parent=1 // pred_check_branch
      %83 = sbr.rel (0) target = $region41
    $region40: #{tpu_custom_call.1} parent=1 // pred_region
      %84 = dma.done [#allocation9], 512
    $region41: #{tpu_custom_call.1} parent=1 // pred_fallthru
      _
    // Predicated region
    $region42: #{tpu_custom_call.1} parent=1 // pred_check
      _
    $region43: #{tpu_custom_call.1} parent=1 // pred_check_branch
      %86 = sbr.rel (0) target = $region45
    $region44: #{tpu_custom_call.1} parent=1 // pred_region
      %87 = dma.done [#allocation9], 512
    $region45: #{tpu_custom_call.1} parent=1 // pred_fallthru
      _
    %v88 = vld [vmem:[#allocation5] sm:$0xff]
    %v89 = vld [vmem:[#allocation2] sm:$0xff]
    %v90 = vld [vmem:[#allocation7] sm:$0xff]
    %v91 = vld [vmem:[#allocation7 + $0x8] sm:$0xff]
    %v92 = vld [vmem:[#allocation8] sm:$0xff]
    %v93 = vld [vmem:[#allocation8 + $0x8] sm:$0xff]
    %v94 = vld [vmem:[#allocation8 + $0x10] sm:$0xff]
    %v95 = vld [vmem:[#allocation8 + $0x18] sm:$0xff]
    %vm96 = vcmask 261120
    %v98 = vsel %vm96, %v88, 0
    %100 = vmatprep.subr.mxu0 0.0
    %101 = vmatpush1.msra.mxu0 %v92
    %102 = vmatprep.subr.mxu0 0.0
    %103 = vmatpush1.msra.mxu0 %v93
    %104 = vmatprep.subr.mxu0 0.0
    %105 = vmatpush1.msra.mxu0 %v94
    %106 = vmatprep.subr.mxu0 0.0
    %107 = vmatpush1.msra.mxu0 %v95
    %108 = vmatprep.subr.mxu0 0.0
    %109 = vmatpush1.msra.mxu0 0.0
    %110 = vmatprep.subr.mxu0 0.0
    %111 = vmatpush1.msra.mxu0 0.0
    %112 = vmatprep.subr.mxu0 0.0
    %113 = vmatpush1.msra.mxu0 0.0
    %114 = vmatprep.subr.mxu0 0.0
    %115 = vmatpush1.msra.mxu0 0.0
    %116 = vmatprep.subr.mxu0 0.0
    %117 = vmatpush1.msra.mxu0 0.0
    %118 = vmatprep.subr.mxu0 0.0
    %119 = vmatpush1.msra.mxu0 0.0
    %120 = vmatprep.subr.mxu0 0.0
    %121 = vmatpush1.msra.mxu0 0.0
    %122 = vmatprep.subr.mxu0 0.0
    %123 = vmatpush1.msra.mxu0 0.0
    %124 = vmatprep.subr.mxu0 0.0
    %125 = vmatpush1.msra.mxu0 0.0
    %126 = vmatprep.subr.mxu0 0.0
    %127 = vmatpush1.msra.mxu0 0.0
    %128 = vmatprep.subr.mxu0 0.0
    %129 = vmatpush1.msra.mxu0 0.0
    %130 = vmatprep.subr.mxu0 0.0
    %131 = vmatpush1.msra.mxu0 0.0
    %132 = vmatprep.subr.mxu0 0.0
    %133 = vmatpush1.msra.mxu0 0.0
    %134 = vmatprep.subr.mxu0 0.0
    %135 = vmatpush1.msra.mxu0 0.0
    %136 = vmatprep.subr.mxu0 0.0
    %137 = vmatpush1.msra.mxu0 0.0
    %138 = vmatprep.subr.mxu0 0.0
    %139 = vmatpush1.msra.mxu0 0.0
    %140 = vmatprep.subr.mxu0 0.0
    %141 = vmatpush1.msra.mxu0 0.0
    %142 = vmatprep.subr.mxu0 0.0
    %143 = vmatpush1.msra.mxu0 0.0
    %144 = vmatprep.subr.mxu0 0.0
    %145 = vmatpush1.msra.mxu0 0.0
    %146 = vmatprep.subr.mxu0 0.0
    %147 = vmatpush1.msra.mxu0 0.0
    %148 = vmatprep.subr.mxu0 0.0
    %149 = vmatpush1.msra.mxu0 0.0
    %150 = vmatprep.subr.mxu0 0.0
    %151 = vmatpush1.msra.mxu0 0.0
    %152 = vmatprep.subr.mxu0 0.0
    %153 = vmatpush1.msra.mxu0 0.0
    %154 = vmatprep.subr.mxu0 0.0
    %155 = vmatpush1.msra.mxu0 0.0
    %156 = vmatprep.subr.mxu0 0.0
    %157 = vmatpush1.msra.mxu0 0.0
    %158 = vmatprep.subr.mxu0 0.0
    %159 = vmatpush1.msra.mxu0 0.0
    %160 = vmatprep.subr.mxu0 0.0
    %161 = vmatpush1.msra.mxu0 0.0
    %162 = vmatprep.subr.mxu0 0.0
    %163 = vmatpush1.msra.mxu0 0.0
    %164 = vmatprep.mubr.f32.mxu0 0.0
    %165 = vmatmul.mubr.f32.gmra.mrb[0].mxu0 %v98
    %v166 = vpop.f32.mrb[0].mxu0
    %v167 = vadd.f32 0.0, %v166
    %v168 = vpop.f32.mrb[0].mxu0
    %169 = vdwg.mxu0
    %vm170 = vcmask 130048
    %v172 = vsel %vm170, %v89, 0
    %174 = vmatprep.subr.mxu0 0.0
    %175 = vmatpush1.msra.mxu0 %v90
    %176 = vmatprep.subr.mxu0 0.0
    %177 = vmatpush1.msra.mxu0 %v91
    %178 = vmatprep.subr.mxu0 0.0
    %179 = vmatpush1.msra.mxu0 0.0
    %180 = vmatprep.subr.mxu0 0.0
    %181 = vmatpush1.msra.mxu0 0.0
    %182 = vmatprep.subr.mxu0 0.0
    %183 = vmatpush1.msra.mxu0 0.0
    %184 = vmatprep.subr.mxu0 0.0
    %185 = vmatpush1.msra.mxu0 0.0
    %186 = vmatprep.subr.mxu0 0.0
    %187 = vmatpush1.msra.mxu0 0.0
    %188 = vmatprep.subr.mxu0 0.0
    %189 = vmatpush1.msra.mxu0 0.0
    %190 = vmatprep.subr.mxu0 0.0
    %191 = vmatpush1.msra.mxu0 0.0
    %192 = vmatprep.subr.mxu0 0.0
    %193 = vmatpush1.msra.mxu0 0.0
    %194 = vmatprep.subr.mxu0 0.0
    %195 = vmatpush1.msra.mxu0 0.0
    %196 = vmatprep.subr.mxu0 0.0
    %197 = vmatpush1.msra.mxu0 0.0
    %198 = vmatprep.subr.mxu0 0.0
    %199 = vmatpush1.msra.mxu0 0.0
    %200 = vmatprep.subr.mxu0 0.0
    %201 = vmatpush1.msra.mxu0 0.0
    %202 = vmatprep.subr.mxu0 0.0
    %203 = vmatpush1.msra.mxu0 0.0
    %204 = vmatprep.subr.mxu0 0.0
    %205 = vmatpush1.msra.mxu0 0.0
    %206 = vmatprep.subr.mxu0 0.0
    %207 = vmatpush1.msra.mxu0 0.0
    %208 = vmatprep.subr.mxu0 0.0
    %209 = vmatpush1.msra.mxu0 0.0
    %210 = vmatprep.subr.mxu0 0.0
    %211 = vmatpush1.msra.mxu0 0.0
    %212 = vmatprep.subr.mxu0 0.0
    %213 = vmatpush1.msra.mxu0 0.0
    %214 = vmatprep.subr.mxu0 0.0
    %215 = vmatpush1.msra.mxu0 0.0
    %216 = vmatprep.subr.mxu0 0.0
    %217 = vmatpush1.msra.mxu0 0.0
    %218 = vmatprep.subr.mxu0 0.0
    %219 = vmatpush1.msra.mxu0 0.0
    %220 = vmatprep.subr.mxu0 0.0
    %221 = vmatpush1.msra.mxu0 0.0
    %222 = vmatprep.subr.mxu0 0.0
    %223 = vmatpush1.msra.mxu0 0.0
    %224 = vmatprep.subr.mxu0 0.0
    %225 = vmatpush1.msra.mxu0 0.0
    %226 = vmatprep.subr.mxu0 0.0
    %227 = vmatpush1.msra.mxu0 0.0
    %228 = vmatprep.subr.mxu0 0.0
    %229 = vmatpush1.msra.mxu0 0.0
    %230 = vmatprep.subr.mxu0 0.0
    %231 = vmatpush1.msra.mxu0 0.0
    %232 = vmatprep.subr.mxu0 0.0
    %233 = vmatpush1.msra.mxu0 0.0
    %234 = vmatprep.subr.mxu0 0.0
    %235 = vmatpush1.msra.mxu0 0.0
    %236 = vmatprep.subr.mxu0 0.0
    %237 = vmatpush1.msra.mxu0 0.0
    %238 = vmatprep.mubr.f32.mxu0 0.0
    %239 = vmatmul.mubr.f32.gmra.mrb[0].mxu0 %v172
    %v240 = vpop.f32.mrb[0].mxu0
    %v241 = vadd.f32 %v167, %v240
    %v242 = vpop.f32.mrb[0].mxu0
    %243 = vdwg.mxu0
    %v244 = vld [vmem:[%s5] sm:$0x1]
    %v246 = vlaneseq
    %v247 = vshrl.u32 %v246, 7
    %v248 = vsub.s32 0, %v247
    %v249 = vrot.slane %v244, %v248
    %v251 = vadd.f32 %v241, %v249
    %v252 = vxor.u32 %v251, 2147483648
    %v253 = vmul.f32 %v252, 1.442695
    %v254 = vpow.pop %v253
    %v255 = vadd.f32 %v254, 1.0
    %v256 = vrcp.pop %v255
    %v257 = vmul.f32 1.0, %v256
    %v258 = vmul.f32 %v257, %v88
    %v259 = vld [vmem:[#allocation10] sm:$0xff]
    %v260 = vld [vmem:[#allocation10 + $0x8] sm:$0xff]
    %v261 = vld [vmem:[#allocation10 + $0x10] sm:$0xff]
    %v262 = vld [vmem:[#allocation10 + $0x18] sm:$0xff]
    %v264 = vsel %vm96, %v258, 0
    %266 = vmatprep.subr.mxu0 0.0
    %267 = vmatpush1.msra.mxu0 %v259
    %268 = vmatprep.subr.mxu0 0.0
    %269 = vmatpush1.msra.mxu0 %v260
    %270 = vmatprep.subr.mxu0 0.0
    %271 = vmatpush1.msra.mxu0 %v261
    %272 = vmatprep.subr.mxu0 0.0
    %273 = vmatpush1.msra.mxu0 %v262
    %274 = vmatprep.subr.mxu0 0.0
    %275 = vmatpush1.msra.mxu0 0.0
    %276 = vmatprep.subr.mxu0 0.0
    %277 = vmatpush1.msra.mxu0 0.0
    %278 = vmatprep.subr.mxu0 0.0
    %279 = vmatpush1.msra.mxu0 0.0
    %280 = vmatprep.subr.mxu0 0.0
    %281 = vmatpush1.msra.mxu0 0.0
    %282 = vmatprep.subr.mxu0 0.0
    %283 = vmatpush1.msra.mxu0 0.0
    %284 = vmatprep.subr.mxu0 0.0
    %285 = vmatpush1.msra.mxu0 0.0
    %286 = vmatprep.subr.mxu0 0.0
    %287 = vmatpush1.msra.mxu0 0.0
    %288 = vmatprep.subr.mxu0 0.0
    %289 = vmatpush1.msra.mxu0 0.0
    %290 = vmatprep.subr.mxu0 0.0
    %291 = vmatpush1.msra.mxu0 0.0
    %292 = vmatprep.subr.mxu0 0.0
    %293 = vmatpush1.msra.mxu0 0.0
    %294 = vmatprep.subr.mxu0 0.0
    %295 = vmatpush1.msra.mxu0 0.0
    %296 = vmatprep.subr.mxu0 0.0
    %297 = vmatpush1.msra.mxu0 0.0
    %298 = vmatprep.subr.mxu0 0.0
    %299 = vmatpush1.msra.mxu0 0.0
    %300 = vmatprep.subr.mxu0 0.0
    %301 = vmatpush1.msra.mxu0 0.0
    %302 = vmatprep.subr.mxu0 0.0
    %303 = vmatpush1.msra.mxu0 0.0
    %304 = vmatprep.subr.mxu0 0.0
    %305 = vmatpush1.msra.mxu0 0.0
    %306 = vmatprep.subr.mxu0 0.0
    %307 = vmatpush1.msra.mxu0 0.0
    %308 = vmatprep.subr.mxu0 0.0
    %309 = vmatpush1.msra.mxu0 0.0
    %310 = vmatprep.subr.mxu0 0.0
    %311 = vmatpush1.msra.mxu0 0.0
    %312 = vmatprep.subr.mxu0 0.0
    %313 = vmatpush1.msra.mxu0 0.0
    %314 = vmatprep.subr.mxu0 0.0
    %315 = vmatpush1.msra.mxu0 0.0
    %316 = vmatprep.subr.mxu0 0.0
    %317 = vmatpush1.msra.mxu0 0.0
    %318 = vmatprep.subr.mxu0 0.0
    %319 = vmatpush1.msra.mxu0 0.0
    %320 = vmatprep.subr.mxu0 0.0
    %321 = vmatpush1.msra.mxu0 0.0
    %322 = vmatprep.subr.mxu0 0.0
    %323 = vmatpush1.msra.mxu0 0.0
    %324 = vmatprep.subr.mxu0 0.0
    %325 = vmatpush1.msra.mxu0 0.0
    %326 = vmatprep.subr.mxu0 0.0
    %327 = vmatpush1.msra.mxu0 0.0
    %328 = vmatprep.subr.mxu0 0.0
    %329 = vmatpush1.msra.mxu0 0.0
    %330 = vmatprep.mubr.f32.mxu0 0.0
    %331 = vmatmul.mubr.f32.gmra.mrb[0].mxu0 %v264
    %v332 = vpop.f32.mrb[0].mxu0
    %v333 = vadd.f32 0.0, %v332
    %v334 = vpop.f32.mrb[0].mxu0
    %335 = vdwg.mxu0
    %337 = vrot.lane.b32.xlu0 %v333, 64
    %v338 = vpop.permute.xlu0 %337
    %v340 = vadd.f32 %v251, %v338
    %v341 = vtanh.pop %v340
    %v342 = vsub.f32 1.0, %v257
    %343 = vrot.lane.b32.xlu0 %v88, 32
    %v344 = vpop.permute.xlu0 %343
    %v346 = vmul.f32 %v342, %v344
    %348 = vrot.lane.b32.xlu0 %v341, 96
    %v349 = vpop.permute.xlu0 %348
    %v351 = vmul.f32 %v257, %v349
    %v352 = vadd.f32 %v346, %v351
    %354 = vrot.lane.b32.xlu0 %v352, 96
    %v355 = vpop.permute.xlu0 %354
    %357 = vst.msk [vmem:[#allocation11] sm:$0xff] %vm96, %v355
    // Predicated region
    $region46: #{tpu_custom_call.1} parent=1 // pred_check
      _
    $region47: #{tpu_custom_call.1} parent=1 // pred_check_branch
      %359 = sbr.rel (0) target = $region49
    $region48: #{tpu_custom_call.1} parent=1 // pred_region
      %s361 = ssub.s32 128, 128
      %362 = vsyncadd [#allocation4], %s361
      %s364 = sshll.u32 [#allocation11], 4
      %s365 = int_to_ptr.vmem [resolvable:$true] %s364
      %367 = dma.vmem_to_hbm [thread:$0]  %s365, 128, %s6, [#allocation4]
    $region49: #{tpu_custom_call.1} parent=1 // pred_fallthru
      _
    // Predicated region
    $region50: #{tpu_custom_call.1} parent=1 // pred_check
      _
    $region51: #{tpu_custom_call.1} parent=1 // pred_check_branch
      %369 = sbr.rel (0) target = $region53
    $region52: #{tpu_custom_call.1} parent=1 // pred_region
      %370 = dma.done [#allocation4], 128
    $region53: #{tpu_custom_call.1} parent=1 // pred_fallthru
      _
    %371 = vsyncpa [#allocation3], 1
    %372 = vsyncpa [#allocation6], 1
    %373 = vsyncpa [#allocation9], 1
    %374 = vsyncpa [#allocation4], 1

</llo_original>
